<compile_context>
chip_gen: v7x
topology: tpu7x:2x2x1
jax: 0.10.0
libtpu: 0.0.40
codegen_flags: <defaults>
</compile_context>

<pallas_src>
import functools

import jax
import jax.numpy as jnp
from jax.experimental import pallas as pl
from jax.experimental.pallas import tpu as pltpu


def _additive_rbf_kernel(x1_ref, x2_ref, o_ref, *, num_kernels, tile_m,
                         use_bf16_exp):
    """One (tn, tm) output tile of sum_k exp(-((x1g[:,k] - x2g[k,:]))^2).

    x1_ref: (tn, K)      rows of x1, pre-scaled by 1/(ls*sqrt(2)) per kernel
    x2_ref: (K, M_pad)   full resident slab of pre-scaled x2 (constant block)
    o_ref : (tn, tm)     lane-dense output tile
    """
    j = pl.program_id(1)
    col = pl.multiple_of(j * tile_m, tile_m)

    acc = jnp.zeros(o_ref.shape, jnp.float32)
    # K (number of component kernels) is small & static -> unrolled python loop.
    # (If K grows large, switch to lax.fori_loop(..., unroll=True).)
    for k in range(num_kernels):
        a = x1_ref[:, k:k + 1]                       # (tn, 1)
        b = x2_ref[k:k + 1, pl.ds(col, tile_m)]      # (1, tm) slice of slab
        d = a - b                                    # (tn, tm)  VPU
        if use_bf16_exp:
            # v6e/v7x-only fast path: EUP bf16 exp ~2x throughput; acc stays f32.
            e = jnp.exp(-(d * d).astype(jnp.bfloat16)).astype(jnp.float32)
        else:
            e = jnp.exp(-(d * d))                    # EUP exp (binding unit)
        acc = acc + e                                # VPU accumulate
    o_ref[...] = acc


def additive_kernel_matrix(x1, x2, active_dims, lengthscales, *,
                           tn=256, tm=512, use_bf16_exp=False):
    """AdditiveKernel forward: sum of single-active-dim RBF kernel matrices.

    x1: (N, D) float32, x2: (M, D) float32
    active_dims: (K,) int     - input column used by each component kernel
    lengthscales: (K,) float32
    returns: (N, M) float32
    """
    N = x1.shape[0]
    M = x2.shape[0]
    K = int(active_dims.shape[0])

    # Glue: gather active dims and fold 1/(ls*sqrt(2)) in (per component kernel),
    # so the kernel only has to compute exp(-(d*d)).
    inv_scale = 1.0 / (lengthscales * (2.0 ** 0.5))          # (K,)
    x1g = x1[:, active_dims] * inv_scale[None, :]            # (N, K)
    x2g = (x2[:, active_dims] * inv_scale[None, :]).T        # (K, M)

    # Tile selection: clamp to shapes, keep the lane dim a multiple of 128 when
    # possible, and keep >=2 grid steps on a parallel axis (v7x has 2 TCs).
    tn = min(tn, N)
    tm = min(tm, M)
    if pl.cdiv(N, tn) * pl.cdiv(M, tm) < 2:
        if M >= 256:
            tm = max(128, ((M // 2) // 128) * 128)
        elif N >= 16:
            tn = max(8, ((N // 2) // 8) * 8)

    grid = (pl.cdiv(N, tn), pl.cdiv(M, tm))

    # Pad x2g along M so the resident slab covers every column any tile touches
    # (avoids OOB reads on the last partial tile). Output stays (N, M).
    m_pad = grid[1] * tm
    if m_pad != M:
        x2g = jnp.pad(x2g, ((0, 0), (0, m_pad - M)))

    kernel = functools.partial(
        _additive_rbf_kernel,
        num_kernels=K, tile_m=tm, use_bf16_exp=use_bf16_exp)

    # Advertise the real (transcendental-heavy) cost to XLA's scheduler.
    cost = pl.CostEstimate(
        flops=3 * N * M * K,
        transcendentals=N * M * K,
        bytes_accessed=4 * (N * M + N * K + K * M),
    )

    return pl.pallas_call(
        kernel,
        out_shape=jax.ShapeDtypeStruct((N, M), jnp.float32),
        grid_spec=pltpu.PrefetchScalarGridSpec(
            num_scalar_prefetch=0,
            grid=grid,
            in_specs=[
                pl.BlockSpec((tn, K), lambda i, j: (i, 0)),      # x1g row tile
                pl.BlockSpec((K, m_pad), lambda i, j: (0, 0)),   # x2g resident slab
            ],
            out_specs=pl.BlockSpec((tn, tm), lambda i, j: (i, j)),
        ),
        compiler_params=pltpu.CompilerParams(
            dimension_semantics=("parallel", "parallel"),
        ),
        cost_estimate=cost,
    )(x1g, x2g)


def additive_kernel_ref(x1, x2, active_dims, lengthscales):
    """Pure-JAX reference mirroring gpytorch AdditiveKernel(RBFKernel(active_dims=...))."""
    res = jnp.zeros((x1.shape[0], x2.shape[0]), jnp.float32)
    for k in range(active_dims.shape[0]):
        a = x1[:, active_dims[k]] / lengthscales[k]
        b = x2[:, active_dims[k]] / lengthscales[k]
        d = a[:, None] - b[None, :]
        res = res + jnp.exp(-0.5 * d * d)
    return res


if __name__ == "__main__":
    key = jax.random.PRNGKey(0)
    k1, k2, k3, k4 = jax.random.split(key, 4)

    # Deterministic parameters (gpytorch: lengthscale = clamp(exp(log_lengthscale))).
    active_dims = jnp.array([1, 2, 4, 7], dtype=jnp.int32)
    log_lengthscale = jnp.array([-0.5, 0.0, 0.3, 0.7], dtype=jnp.float32)
    lengthscales = jnp.clip(jnp.exp(log_lengthscale), 1e-6, 1e5)

    # --- case 1: tile-aligned shapes ---
    N, M, D = 128, 256, 8
    x1 = jax.random.normal(k1, (N, D), dtype=jnp.float32)
    x2 = jax.random.normal(k2, (M, D), dtype=jnp.float32)

    out = jax.block_until_ready(
        additive_kernel_matrix(x1, x2, active_dims, lengthscales))
    ref = additive_kernel_ref(x1, x2, active_dims, lengthscales)
    assert out.shape == (N, M)
    assert jnp.allclose(out, ref, atol=1e-5, rtol=1e-5), "mismatch vs reference"

    # --- case 2: shapes not divisible by the tile (exercises pl.cdiv grid) ---
    N2, M2 = 100, 200
    x1b = jax.random.normal(k3, (N2, D), dtype=jnp.float32)
    x2b = jax.random.normal(k4, (M2, D), dtype=jnp.float32)

    out2 = jax.block_until_ready(
        additive_kernel_matrix(x1b, x2b, active_dims, lengthscales))
    ref2 = additive_kernel_ref(x1b, x2b, active_dims, lengthscales)
    assert out2.shape == (N2, M2)
    assert jnp.allclose(out2, ref2, atol=1e-5, rtol=1e-5), "mismatch (ragged) vs reference"

    # TODO(synk): gpytorch's lazy-tensor machinery (LazyEvaluatedKernelTensor,
    # diag / batch_dims modes, arbitrary component-kernel Modules) has no Pallas
    # equivalent; only the dense full-covar sum-of-RBF forward is implemented.

    print("KERNEL_OK")
</pallas_src>

<mosaic_0001>
module attributes {stable_mosaic.version = 11 : i64} {
  func.func @_additive_rbf_kernel(%arg0: i32, %arg1: i32, %arg2: memref<128x4xf32, #tpu.memory_space<vmem>>, %arg3: memref<4x256xf32, #tpu.memory_space<vmem>>, %arg4: memref<128x128xf32, #tpu.memory_space<vmem>>) attributes {dimension_semantics = [#tpu.dimension_semantics<parallel>, #tpu.dimension_semantics<parallel>], iteration_bounds = array<i64: 1, 2>, scalar_prefetch = 0 : i64, scratch_operands = 0 : i64, tpu.core_type = #tpu.core_type<tc>, window_params = [{transform_indices = @transform_0, window_bounds = array<i64: 128, 4>}, {pipeline_mode = #tpu.pipeline_mode<synchronous>, transform_indices = @transform_1, window_bounds = array<i64: 4, 256>}, {transform_indices = @transform_2, window_bounds = array<i64: 128, 128>}]} {
    %c128_i32 = arith.constant 128 : i32
    %0 = arith.muli %arg1, %c128_i32 : i32
    %1 = tpu.assume_multiple %0, 128 : i32
    %cst = arith.constant 0.000000e+00 : f32
    %2 = vector.broadcast %cst : f32 to vector<128x128xf32>
    %c0 = arith.constant 0 : index
    %c0_0 = arith.constant 0 : index
    %3 = vector.load %arg2[%c0, %c0_0] : memref<128x4xf32, #tpu.memory_space<vmem>>, vector<128x1xf32>
    %c0_1 = arith.constant 0 : index
    %4 = arith.index_cast %1 : i32 to index
    %5 = vector.load %arg3[%c0_1, %4] : memref<4x256xf32, #tpu.memory_space<vmem>>, vector<1x128xf32>
    %6 = vector.broadcast %3 : vector<128x1xf32> to vector<128x128xf32>
    %7 = vector.broadcast %5 : vector<1x128xf32> to vector<128x128xf32>
    %8 = arith.subf %6, %7 : vector<128x128xf32>
    %9 = arith.mulf %8, %8 : vector<128x128xf32>
    %cst_2 = arith.constant 0.000000e+00 : f32
    %10 = vector.broadcast %cst_2 : f32 to vector<128x128xf32>
    %11 = arith.subf %10, %9 : vector<128x128xf32>
    %12 = math.exp %11 : vector<128x128xf32>
    %13 = arith.addf %2, %12 : vector<128x128xf32>
    %c0_3 = arith.constant 0 : index
    %c1 = arith.constant 1 : index
    %14 = vector.load %arg2[%c0_3, %c1] : memref<128x4xf32, #tpu.memory_space<vmem>>, vector<128x1xf32>
    %c1_4 = arith.constant 1 : index
    %15 = arith.index_cast %1 : i32 to index
    %16 = vector.load %arg3[%c1_4, %15] : memref<4x256xf32, #tpu.memory_space<vmem>>, vector<1x128xf32>
    %17 = vector.broadcast %14 : vector<128x1xf32> to vector<128x128xf32>
    %18 = vector.broadcast %16 : vector<1x128xf32> to vector<128x128xf32>
    %19 = arith.subf %17, %18 : vector<128x128xf32>
    %20 = arith.mulf %19, %19 : vector<128x128xf32>
    %cst_5 = arith.constant 0.000000e+00 : f32
    %21 = vector.broadcast %cst_5 : f32 to vector<128x128xf32>
    %22 = arith.subf %21, %20 : vector<128x128xf32>
    %23 = math.exp %22 : vector<128x128xf32>
    %24 = arith.addf %13, %23 : vector<128x128xf32>
    %c0_6 = arith.constant 0 : index
    %c2 = arith.constant 2 : index
    %25 = vector.load %arg2[%c0_6, %c2] : memref<128x4xf32, #tpu.memory_space<vmem>>, vector<128x1xf32>
    %c2_7 = arith.constant 2 : index
    %26 = arith.index_cast %1 : i32 to index
    %27 = vector.load %arg3[%c2_7, %26] : memref<4x256xf32, #tpu.memory_space<vmem>>, vector<1x128xf32>
    %28 = vector.broadcast %25 : vector<128x1xf32> to vector<128x128xf32>
    %29 = vector.broadcast %27 : vector<1x128xf32> to vector<128x128xf32>
    %30 = arith.subf %28, %29 : vector<128x128xf32>
    %31 = arith.mulf %30, %30 : vector<128x128xf32>
    %cst_8 = arith.constant 0.000000e+00 : f32
    %32 = vector.broadcast %cst_8 : f32 to vector<128x128xf32>
    %33 = arith.subf %32, %31 : vector<128x128xf32>
    %34 = math.exp %33 : vector<128x128xf32>
    %35 = arith.addf %24, %34 : vector<128x128xf32>
    %c0_9 = arith.constant 0 : index
    %c3 = arith.constant 3 : index
    %36 = vector.load %arg2[%c0_9, %c3] : memref<128x4xf32, #tpu.memory_space<vmem>>, vector<128x1xf32>
    %c3_10 = arith.constant 3 : index
    %37 = arith.index_cast %1 : i32 to index
    %38 = vector.load %arg3[%c3_10, %37] : memref<4x256xf32, #tpu.memory_space<vmem>>, vector<1x128xf32>
    %39 = vector.broadcast %36 : vector<128x1xf32> to vector<128x128xf32>
    %40 = vector.broadcast %38 : vector<1x128xf32> to vector<128x128xf32>
    %41 = arith.subf %39, %40 : vector<128x128xf32>
    %42 = arith.mulf %41, %41 : vector<128x128xf32>
    %cst_11 = arith.constant 0.000000e+00 : f32
    %43 = vector.broadcast %cst_11 : f32 to vector<128x128xf32>
    %44 = arith.subf %43, %42 : vector<128x128xf32>
    %45 = math.exp %44 : vector<128x128xf32>
    %46 = arith.addf %35, %45 : vector<128x128xf32>
    %c0_12 = arith.constant 0 : index
    %c0_13 = arith.constant 0 : index
    %47 = vector.load %arg4[%c0_12, %c0_13] : memref<128x128xf32, #tpu.memory_space<vmem>>, vector<128x128xf32>
    tpu.vector_store %arg4[%c0_12, %c0_13], %46 {strides = array<i32>} : memref<128x128xf32, #tpu.memory_space<vmem>>, vector<128x128xf32>,
    return
  }
  func.func @transform_0(%arg0: i32, %arg1: i32) -> (i32, i32) {
    %c0_i32 = arith.constant 0 : i32
    %c0_i32_0 = arith.constant 0 : i32
    return %arg0, %c0_i32 : i32, i32
  }
  func.func @transform_1(%arg0: i32, %arg1: i32) -> (i32, i32) {
    %c0_i32 = arith.constant 0 : i32
    %c0_i32_0 = arith.constant 0 : i32
    %c0_i32_1 = arith.constant 0 : i32
    return %c0_i32, %c0_i32_0 : i32, i32
  }
  func.func @transform_2(%arg0: i32, %arg1: i32) -> (i32, i32) {
    %c0_i32 = arith.constant 0 : i32
    return %arg0, %arg1 : i32, i32
  }
}

</mosaic_0001>

<llo_original>
// kernel: tpu_custom_call.1
$region0: #{tpu_custom_call.1}
  #allocation0 [shape = 'u32[]', space=smem, size = 0x4, offset = 0x4, fixed_abs, tag = 'smem constant byte address 0x4 - core index']
  #allocation1 [shape = 'u32[144,128]{1,0:T(1,128)}', space=vmem, size = 0x12000, scoped, tag = 'internal scratch']
  %s0 = inlined_call_operand.vmem [shape: f32[128,4], index: 0, kind: input, shape index: {}]
  %s1 = inlined_call_operand.vmem [shape: f32[4,256], index: 1, kind: input, shape index: {}]
  %s2 = inlined_call_operand.hbm [shape: f32[128,256], index: 2, kind: output, shape index: {}]
  %s3 = sld [smem:[#allocation0]]
  $region41: #{tpu_custom_call.1} parent=0
    _
  %s5 = ssub.s32 1, %s3
  %s6 = scalar_select 0, %s5, %s3
  $region1: #{tpu_custom_call.1} parent=0
    #allocation2 [shape = 'u8[131072]{0}', space=vmem, size = 0x20000, scoped, tag = 'output window, operand 0']
    #allocation3 [shape = 's32[2]{0}', space=sflag, size = 0x8, scoped, tag = 'scoped memory for tpu_custom_call.1']
    %7 = vsyncpa [#allocation3], 0
    %s8 = scalar_lea.sflag [#allocation3], 1
    %9 = vsyncpa %s8, 0
    loop: start=0, step=1, limit=4
    $region2: #{tpu_custom_call.1} parent=1 // loop_pre_header
      _
    $region3: #{tpu_custom_call.1} parent=1 // loop_header
      %s11 = sphi 0, %s15
      %p12 = scmp.ge.s32.totalorder %s11, 4
      %s18 = sphi 0, %s30
      %s19 = sphi 0, %s26
      %s20 = sphi 0, %s18
      %s21 = sphi 0, %s19
      %s22 = sphi 0, %s20
      %s23 = sphi 0, %s21
      %s33 = sphi 0, %s35
      %s36 = sphi 0, %s33
      %s37 = sphi 0, %s36
      %s53 = sphi 0, %s37
      %s57 = sphi 0, %s57
      %s59 = sphi 0, %s57
      %s60 = sphi 0, %s59
      %s74 = sphi 0, %s60
      %s82 = sphi 0, %s84
      %s85 = sphi 0, %s82
      %s86 = sphi 0, %s85
      %s102 = sphi 0, %s86
    $region4: #{tpu_custom_call.1} parent=1 // loop_header_branch
      %14 = sbr.rel (%p12) target = $region8
    $region5: #{tpu_custom_call.1} parent=1 // loop_body
      %s16 = ssub.s32 %s11, 1
      %s17 = ssub.s32 %s11, 2
      %s24 = sadd.s32 1, %s19
      %p25 = scmp.ge.s32.totalorder %s24, 2
      %s26 = scalar_select %p25, 0, %s24
      %s27 = sadd.s32 1, %s18
      %s28 = scalar_select %p25, %s27, %s18
      %p29 = scmp.ge.s32.totalorder %s28, 1
      %s30 = scalar_select %p29, 0, %s28
      %s31 = ssub.s32 %s18, %s30
      %p32 = scmp.eq.s32.totalorder %s31, 0
      %s34 = sadd.s32 %s33, 1
      %s35 = scalar_select %p32, %s33, %s34
      %p38 = pneg %p32
      %p39 = scmp.eq.s32.totalorder %s11, 1
      %p40 = por %p38, %p39
      %p41 = scmp.ne.s32.totalorder %s33, %s36
      %p42 = scmp.eq.s32.totalorder %s11, 0
      %p43 = por %p41, %p42
      %p44 = scmp.ne.s32.totalorder %s33, %s36
      %p45 = scmp.eq.s32.totalorder %s16, 1
      %p46 = por %p44, %p45
      %p47 = scmp.ne.s32.totalorder %s36, %s37
      %p48 = scmp.eq.s32.totalorder %s16, 0
      %p49 = por %p47, %p48
      %p50 = scmp.ne.s32.totalorder %s36, %s37
      %p51 = scmp.eq.s32.totalorder %s17, 1
      %p52 = por %p50, %p51
      %p54 = scmp.ne.s32.totalorder %s37, %s53
      %p55 = scmp.eq.s32.totalorder %s17, 0
      %p56 = por %p54, %p55
      %s58 = sadd.s32 %s57, 1
      %p61 = scmp.eq.s32.totalorder %s11, 1
      %p62 = scmp.ne.s32.totalorder %s57, %s59
      %p63 = scmp.eq.s32.totalorder %s11, 0
      %p64 = por %p62, %p63
      %p65 = scmp.ne.s32.totalorder %s57, %s59
      %p66 = scmp.eq.s32.totalorder %s16, 1
      %p67 = por %p65, %p66
      %p68 = scmp.ne.s32.totalorder %s59, %s60
      %p69 = scmp.eq.s32.totalorder %s16, 0
      %p70 = por %p68, %p69
      %p71 = scmp.ne.s32.totalorder %s59, %s60
      %p72 = scmp.eq.s32.totalorder %s17, 1
      %p73 = por %p71, %p72
      %p75 = scmp.ne.s32.totalorder %s60, %s74
      %p76 = scmp.eq.s32.totalorder %s17, 0
      %p77 = por %p75, %p76
      %s78 = ssub.s32 %s18, %s30
      %s79 = ssub.s32 %s19, %s26
      %s80 = sor.u32 %s78, %s79
      %p81 = scmp.eq.s32.totalorder %s80, 0
      %s83 = sadd.s32 %s82, 1
      %s84 = scalar_select %p81, %s82, %s83
      %p87 = pneg %p81
      %p88 = scmp.eq.s32.totalorder %s11, 1
      %p89 = por %p87, %p88
      %p90 = scmp.ne.s32.totalorder %s82, %s85
      %p91 = scmp.eq.s32.totalorder %s11, 0
      %p92 = por %p90, %p91
      %p93 = scmp.ne.s32.totalorder %s82, %s85
      %p94 = scmp.eq.s32.totalorder %s16, 1
      %p95 = por %p93, %p94
      %p96 = scmp.ne.s32.totalorder %s85, %s86
      %p97 = scmp.eq.s32.totalorder %s16, 0
      %p98 = por %p96, %p97
      %p99 = scmp.ne.s32.totalorder %s85, %s86
      %p100 = scmp.eq.s32.totalorder %s17, 1
      %p101 = por %p99, %p100
      %p103 = scmp.ne.s32.totalorder %s86, %s102
      %p104 = scmp.eq.s32.totalorder %s17, 0
      %p105 = por %p103, %p104
      %p106 = scmp.le.s32.totalorder 1, %s11
      %p107 = scmp.lt.s32.totalorder %s11, 3
      %p108 = pnand %p106, %p107
      %p109 = pneg %p108
      // Predicated region
      $region9: #{tpu_custom_call.1} parent=5 // pred_check
        _
      $region10: #{tpu_custom_call.1} parent=5 // pred_check_branch
        %111 = sbr.rel (%p108) target = $region12
      $region11: #{tpu_custom_call.1} parent=5 // pred_region
        %s112 = ssub.s32 %s11, 1
        // Predicated region
        $region13: #{tpu_custom_call.1} parent=11 // pred_check
          %p113 = pneg %p49
        $region14: #{tpu_custom_call.1} parent=11 // pred_check_branch
          %115 = sbr.rel (%p113) target = $region16
        $region15: #{tpu_custom_call.1} parent=11 // pred_region
          %s116 = smul.u32 16, %s20
          %p117 = scmp.lt.s32.totalorder %s116, 15
          %s118 = scalar_select %p117, %s116, 15
          %s119 = smul.addr %s118, 8
          %s120 = scalar_lea.vmem %s0, %s119
          %s121 = smul.u32 16, %s20
        $region16: #{tpu_custom_call.1} parent=11 // pred_fallthru
          _
        // Predicated region
        $region17: #{tpu_custom_call.1} parent=11 // pred_check
          %p122 = pneg %p70
        $region18: #{tpu_custom_call.1} parent=11 // pred_check_branch
          %124 = sbr.rel (%p122) target = $region20
        $region19: #{tpu_custom_call.1} parent=11 // pred_region
          _
        $region20: #{tpu_custom_call.1} parent=11 // pred_fallthru
          _
      $region12: #{tpu_custom_call.1} parent=5 // pred_fallthru
        _
      %p125 = scmp.lt.s32.totalorder %s11, 2
      // Predicated region
      $region21: #{tpu_custom_call.1} parent=5 // pred_check
        %p126 = pneg %p125
      $region22: #{tpu_custom_call.1} parent=5 // pred_check_branch
        %128 = sbr.rel (%p126) target = $region24
      $region23: #{tpu_custom_call.1} parent=5 // pred_region
        _
      $region24: #{tpu_custom_call.1} parent=5 // pred_fallthru
        _
      %p129 = scmp.le.s32.totalorder 1, %s11
      %p130 = scmp.lt.s32.totalorder %s11, 3
      %p131 = pnand %p129, %p130
      %p132 = pneg %p131
      // Predicated region
      $region25: #{tpu_custom_call.1} parent=5 // pred_check
        _
      $region26: #{tpu_custom_call.1} parent=5 // pred_check_branch
        %134 = sbr.rel (%p131) target = $region28
      $region27: #{tpu_custom_call.1} parent=5 // pred_region
        %s135 = ssub.s32 %s11, 1
        %s136 = smul.u32 16, %s20
        %p137 = scmp.lt.s32.totalorder %s136, 15
        %s138 = scalar_select %p137, %s136, 15
        %s139 = smul.addr %s138, 8
        %s140 = scalar_lea.vmem %s0, %s139
        %p141 = pneg %p49
        %p142 = pneg %p46
        %p143 = pneg %p70
        %p144 = pneg %p67
        %p145 = pneg %p98
        %p146 = pneg %p95
        %s147 = sand.u32 %s85, 1
        %s148 = scalar_lea.sflag [#allocation3], %s147
        %s149 = sand.u32 %s85, 1
        %s150 = smul.addr %s149, 128
        %s151 = scalar_lea.vmem [#allocation2], %s150
        %s152 = smul.u32 16, %s20
        %p153 = scmp.lt.s32.totalorder %s152, 15
        %s154 = scalar_select %p153, %s152, 15
        %s155 = smul.addr %s154, 8
        %s156 = scalar_lea.vmem %s0, %s155
        %s157 = smul.u32 16, %s20
        %s158 = smul.u32 16, %s20
        %s159 = smul.u32 %s21, 128
        %v160 = vld [vmem:[%s156] sm:$0xff]
        %v161 = vld [vmem:[%s156 + $0x8] sm:$0xff]
        %v162 = vld [vmem:[%s156 + $0x10] sm:$0xff]
        %v163 = vld [vmem:[%s156 + $0x18] sm:$0xff]
        %v164 = vld [vmem:[%s156 + $0x20] sm:$0xff]
        %v165 = vld [vmem:[%s156 + $0x28] sm:$0xff]
        %v166 = vld [vmem:[%s156 + $0x30] sm:$0xff]
        %v167 = vld [vmem:[%s156 + $0x38] sm:$0xff]
        %v168 = vld [vmem:[%s156 + $0x40] sm:$0xff]
        %v169 = vld [vmem:[%s156 + $0x48] sm:$0xff]
        %v170 = vld [vmem:[%s156 + $0x50] sm:$0xff]
        %v171 = vld [vmem:[%s156 + $0x58] sm:$0xff]
        %v172 = vld [vmem:[%s156 + $0x60] sm:$0xff]
        %v173 = vld [vmem:[%s156 + $0x68] sm:$0xff]
        %v174 = vld [vmem:[%s156 + $0x70] sm:$0xff]
        %v175 = vld [vmem:[%s156 + $0x78] sm:$0xff]
        %s176 = sshra.s32 %s159, 7
        %s177 = sand.u32 %s159, 127
        %s178 = smul.addr %s176, 4
        %s179 = scalar_lea.vmem %s1, %s178
        %v180 = vld [vmem:[%s179] sm:$0x1]
        %182 = vset.pattern.permute.xlu0 0
        %183 = vperm.xlu0 %182, %v160
        %v184 = vpop.permute.xlu0 %183
        %187 = vset.pattern.permute.xlu0 0
        %188 = vperm.xlu0 %187, %v161
        %v189 = vpop.permute.xlu0 %188
        %192 = vset.pattern.permute.xlu0 0
        %193 = vperm.xlu0 %192, %v162
        %v194 = vpop.permute.xlu0 %193
        %197 = vset.pattern.permute.xlu0 0
        %198 = vperm.xlu0 %197, %v163
        %v199 = vpop.permute.xlu0 %198
        %202 = vset.pattern.permute.xlu0 0
        %203 = vperm.xlu0 %202, %v164
        %v204 = vpop.permute.xlu0 %203
        %207 = vset.pattern.permute.xlu0 0
        %208 = vperm.xlu0 %207, %v165
        %v209 = vpop.permute.xlu0 %208
        %212 = vset.pattern.permute.xlu0 0
        %213 = vperm.xlu0 %212, %v166
        %v214 = vpop.permute.xlu0 %213
        %217 = vset.pattern.permute.xlu0 0
        %218 = vperm.xlu0 %217, %v167
        %v219 = vpop.permute.xlu0 %218
        %222 = vset.pattern.permute.xlu0 0
        %223 = vperm.xlu0 %222, %v168
        %v224 = vpop.permute.xlu0 %223
        %227 = vset.pattern.permute.xlu0 0
        %228 = vperm.xlu0 %227, %v169
        %v229 = vpop.permute.xlu0 %228
        %232 = vset.pattern.permute.xlu0 0
        %233 = vperm.xlu0 %232, %v170
        %v234 = vpop.permute.xlu0 %233
        %237 = vset.pattern.permute.xlu0 0
        %238 = vperm.xlu0 %237, %v171
        %v239 = vpop.permute.xlu0 %238
        %242 = vset.pattern.permute.xlu0 0
        %243 = vperm.xlu0 %242, %v172
        %v244 = vpop.permute.xlu0 %243
        %247 = vset.pattern.permute.xlu0 0
        %248 = vperm.xlu0 %247, %v173
        %v249 = vpop.permute.xlu0 %248
        %252 = vset.pattern.permute.xlu0 0
        %253 = vperm.xlu0 %252, %v174
        %v254 = vpop.permute.xlu0 %253
        %257 = vset.pattern.permute.xlu0 0
        %258 = vperm.xlu0 %257, %v175
        %v259 = vpop.permute.xlu0 %258
        %v261 = vlaneseq
        %v262 = vshrl.u32 %v261, 7
        %v263 = vsub.s32 0, %v262
        %v264 = vrot.slane %v180, %v263
        %v265 = vsub.f32 %v184, %v264
        %v266 = vsub.f32 %v189, %v264
        %v267 = vsub.f32 %v194, %v264
        %v268 = vsub.f32 %v199, %v264
        %v269 = vsub.f32 %v204, %v264
        %v270 = vsub.f32 %v209, %v264
        %v271 = vsub.f32 %v214, %v264
        %v272 = vsub.f32 %v219, %v264
        %v273 = vsub.f32 %v224, %v264
        %v274 = vsub.f32 %v229, %v264
        %v275 = vsub.f32 %v234, %v264
        %v276 = vsub.f32 %v239, %v264
        %v277 = vsub.f32 %v244, %v264
        %v278 = vsub.f32 %v249, %v264
        %v279 = vsub.f32 %v254, %v264
        %v280 = vsub.f32 %v259, %v264
        %v281 = vmul.f32 %v265, %v265
        %v282 = vmul.f32 %v266, %v266
        %v283 = vmul.f32 %v267, %v267
        %v284 = vmul.f32 %v268, %v268
        %v285 = vmul.f32 %v269, %v269
        %v286 = vmul.f32 %v270, %v270
        %v287 = vmul.f32 %v271, %v271
        %v288 = vmul.f32 %v272, %v272
        %v289 = vmul.f32 %v273, %v273
        %v290 = vmul.f32 %v274, %v274
        %v291 = vmul.f32 %v275, %v275
        %v292 = vmul.f32 %v276, %v276
        %v293 = vmul.f32 %v277, %v277
        %v294 = vmul.f32 %v278, %v278
        %v295 = vmul.f32 %v279, %v279
        %v296 = vmul.f32 %v280, %v280
        %v297 = vsub.f32 0.0, %v281
        %v298 = vsub.f32 0.0, %v282
        %v299 = vsub.f32 0.0, %v283
        %v300 = vsub.f32 0.0, %v284
        %v301 = vsub.f32 0.0, %v285
        %v302 = vsub.f32 0.0, %v286
        %v303 = vsub.f32 0.0, %v287
        %v304 = vsub.f32 0.0, %v288
        %v305 = vsub.f32 0.0, %v289
        %v306 = vsub.f32 0.0, %v290
        %v307 = vsub.f32 0.0, %v291
        %v308 = vsub.f32 0.0, %v292
        %v309 = vsub.f32 0.0, %v293
        %v310 = vsub.f32 0.0, %v294
        %v311 = vsub.f32 0.0, %v295
        %v312 = vsub.f32 0.0, %v296
        %v313 = vmul.f32 %v297, 1.442695
        %v314 = vpow.pop %v313
        %v315 = vmul.f32 %v298, 1.442695
        %v316 = vpow.pop %v315
        %v317 = vmul.f32 %v299, 1.442695
        %v318 = vpow.pop %v317
        %v319 = vmul.f32 %v300, 1.442695
        %v320 = vpow.pop %v319
        %v321 = vmul.f32 %v301, 1.442695
        %v322 = vpow.pop %v321
        %v323 = vmul.f32 %v302, 1.442695
        %v324 = vpow.pop %v323
        %v325 = vmul.f32 %v303, 1.442695
        %v326 = vpow.pop %v325
        %v327 = vmul.f32 %v304, 1.442695
        %v328 = vpow.pop %v327
        %v329 = vmul.f32 %v305, 1.442695
        %v330 = vpow.pop %v329
        %v331 = vmul.f32 %v306, 1.442695
        %v332 = vpow.pop %v331
        %v333 = vmul.f32 %v307, 1.442695
        %v334 = vpow.pop %v333
        %v335 = vmul.f32 %v308, 1.442695
        %v336 = vpow.pop %v335
        %v337 = vmul.f32 %v309, 1.442695
        %v338 = vpow.pop %v337
        %v339 = vmul.f32 %v310, 1.442695
        %v340 = vpow.pop %v339
        %v341 = vmul.f32 %v311, 1.442695
        %v342 = vpow.pop %v341
        %v343 = vmul.f32 %v312, 1.442695
        %v344 = vpow.pop %v343
        %v345 = vadd.f32 %v314, 0.0
        %v346 = vadd.f32 %v316, 0.0
        %v347 = vadd.f32 %v318, 0.0
        %v348 = vadd.f32 %v320, 0.0
        %v349 = vadd.f32 %v322, 0.0
        %v350 = vadd.f32 %v324, 0.0
        %v351 = vadd.f32 %v326, 0.0
        %v352 = vadd.f32 %v328, 0.0
        %v353 = vadd.f32 %v330, 0.0
        %v354 = vadd.f32 %v332, 0.0
        %v355 = vadd.f32 %v334, 0.0
        %v356 = vadd.f32 %v336, 0.0
        %v357 = vadd.f32 %v338, 0.0
        %v358 = vadd.f32 %v340, 0.0
        %v359 = vadd.f32 %v342, 0.0
        %v360 = vadd.f32 %v344, 0.0
        %v361 = vld [vmem:[%s179 + $0x1] sm:$0x1]
        %362 = vset.pattern.permute.xlu0 1
        %363 = vperm.xlu0 %362, %v160
        %v364 = vpop.permute.xlu0 %363
        %366 = vset.pattern.permute.xlu0 1
        %367 = vperm.xlu0 %366, %v161
        %v368 = vpop.permute.xlu0 %367
        %370 = vset.pattern.permute.xlu0 1
        %371 = vperm.xlu0 %370, %v162
        %v372 = vpop.permute.xlu0 %371
        %374 = vset.pattern.permute.xlu0 1
        %375 = vperm.xlu0 %374, %v163
        %v376 = vpop.permute.xlu0 %375
        %378 = vset.pattern.permute.xlu0 1
        %379 = vperm.xlu0 %378, %v164
        %v380 = vpop.permute.xlu0 %379
        %382 = vset.pattern.permute.xlu0 1
        %383 = vperm.xlu0 %382, %v165
        %v384 = vpop.permute.xlu0 %383
        %386 = vset.pattern.permute.xlu0 1
        %387 = vperm.xlu0 %386, %v166
        %v388 = vpop.permute.xlu0 %387
        %390 = vset.pattern.permute.xlu0 1
        %391 = vperm.xlu0 %390, %v167
        %v392 = vpop.permute.xlu0 %391
        %394 = vset.pattern.permute.xlu0 1
        %395 = vperm.xlu0 %394, %v168
        %v396 = vpop.permute.xlu0 %395
        %398 = vset.pattern.permute.xlu0 1
        %399 = vperm.xlu0 %398, %v169
        %v400 = vpop.permute.xlu0 %399
        %402 = vset.pattern.permute.xlu0 1
        %403 = vperm.xlu0 %402, %v170
        %v404 = vpop.permute.xlu0 %403
        %406 = vset.pattern.permute.xlu0 1
        %407 = vperm.xlu0 %406, %v171
        %v408 = vpop.permute.xlu0 %407
        %410 = vset.pattern.permute.xlu0 1
        %411 = vperm.xlu0 %410, %v172
        %v412 = vpop.permute.xlu0 %411
        %414 = vset.pattern.permute.xlu0 1
        %415 = vperm.xlu0 %414, %v173
        %v416 = vpop.permute.xlu0 %415
        %418 = vset.pattern.permute.xlu0 1
        %419 = vperm.xlu0 %418, %v174
        %v420 = vpop.permute.xlu0 %419
        %422 = vset.pattern.permute.xlu0 1
        %423 = vperm.xlu0 %422, %v175
        %v424 = vpop.permute.xlu0 %423
        %v426 = vlaneseq
        %v427 = vshrl.u32 %v426, 7
        %v428 = vsub.s32 0, %v427
        %v429 = vrot.slane %v361, %v428
        %v430 = vsub.f32 %v364, %v429
        %v431 = vsub.f32 %v368, %v429
        %v432 = vsub.f32 %v372, %v429
        %v433 = vsub.f32 %v376, %v429
        %v434 = vsub.f32 %v380, %v429
        %v435 = vsub.f32 %v384, %v429
        %v436 = vsub.f32 %v388, %v429
        %v437 = vsub.f32 %v392, %v429
        %v438 = vsub.f32 %v396, %v429
        %v439 = vsub.f32 %v400, %v429
        %v440 = vsub.f32 %v404, %v429
        %v441 = vsub.f32 %v408, %v429
        %v442 = vsub.f32 %v412, %v429
        %v443 = vsub.f32 %v416, %v429
        %v444 = vsub.f32 %v420, %v429
        %v445 = vsub.f32 %v424, %v429
        %v446 = vmul.f32 %v430, %v430
        %v447 = vmul.f32 %v431, %v431
        %v448 = vmul.f32 %v432, %v432
        %v449 = vmul.f32 %v433, %v433
        %v450 = vmul.f32 %v434, %v434
        %v451 = vmul.f32 %v435, %v435
        %v452 = vmul.f32 %v436, %v436
        %v453 = vmul.f32 %v437, %v437
        %v454 = vmul.f32 %v438, %v438
        %v455 = vmul.f32 %v439, %v439
        %v456 = vmul.f32 %v440, %v440
        %v457 = vmul.f32 %v441, %v441
        %v458 = vmul.f32 %v442, %v442
        %v459 = vmul.f32 %v443, %v443
        %v460 = vmul.f32 %v444, %v444
        %v461 = vmul.f32 %v445, %v445
        %v462 = vsub.f32 0.0, %v446
        %v463 = vsub.f32 0.0, %v447
        %v464 = vsub.f32 0.0, %v448
        %v465 = vsub.f32 0.0, %v449
        %v466 = vsub.f32 0.0, %v450
        %v467 = vsub.f32 0.0, %v451
        %v468 = vsub.f32 0.0, %v452
        %v469 = vsub.f32 0.0, %v453
        %v470 = vsub.f32 0.0, %v454
        %v471 = vsub.f32 0.0, %v455
        %v472 = vsub.f32 0.0, %v456
        %v473 = vsub.f32 0.0, %v457
        %v474 = vsub.f32 0.0, %v458
        %v475 = vsub.f32 0.0, %v459
        %v476 = vsub.f32 0.0, %v460
        %v477 = vsub.f32 0.0, %v461
        %v478 = vmul.f32 %v462, 1.442695
        %v479 = vpow.pop %v478
        %v480 = vmul.f32 %v463, 1.442695
        %v481 = vpow.pop %v480
        %v482 = vmul.f32 %v464, 1.442695
        %v483 = vpow.pop %v482
        %v484 = vmul.f32 %v465, 1.442695
        %v485 = vpow.pop %v484
        %v486 = vmul.f32 %v466, 1.442695
        %v487 = vpow.pop %v486
        %v488 = vmul.f32 %v467, 1.442695
        %v489 = vpow.pop %v488
        %v490 = vmul.f32 %v468, 1.442695
        %v491 = vpow.pop %v490
        %v492 = vmul.f32 %v469, 1.442695
        %v493 = vpow.pop %v492
        %v494 = vmul.f32 %v470, 1.442695
        %v495 = vpow.pop %v494
        %v496 = vmul.f32 %v471, 1.442695
        %v497 = vpow.pop %v496
        %v498 = vmul.f32 %v472, 1.442695
        %v499 = vpow.pop %v498
        %v500 = vmul.f32 %v473, 1.442695
        %v501 = vpow.pop %v500
        %v502 = vmul.f32 %v474, 1.442695
        %v503 = vpow.pop %v502
        %v504 = vmul.f32 %v475, 1.442695
        %v505 = vpow.pop %v504
        %v506 = vmul.f32 %v476, 1.442695
        %v507 = vpow.pop %v506
        %v508 = vmul.f32 %v477, 1.442695
        %v509 = vpow.pop %v508
        %v510 = vadd.f32 %v345, %v479
        %v511 = vadd.f32 %v346, %v481
        %v512 = vadd.f32 %v347, %v483
        %v513 = vadd.f32 %v348, %v485
        %v514 = vadd.f32 %v349, %v487
        %v515 = vadd.f32 %v350, %v489
        %v516 = vadd.f32 %v351, %v491
        %v517 = vadd.f32 %v352, %v493
        %v518 = vadd.f32 %v353, %v495
        %v519 = vadd.f32 %v354, %v497
        %v520 = vadd.f32 %v355, %v499
        %v521 = vadd.f32 %v356, %v501
        %v522 = vadd.f32 %v357, %v503
        %v523 = vadd.f32 %v358, %v505
        %v524 = vadd.f32 %v359, %v507
        %v525 = vadd.f32 %v360, %v509
        %v526 = vld [vmem:[%s179 + $0x2] sm:$0x1]
        %527 = vset.pattern.permute.xlu0 2
        %528 = vperm.xlu0 %527, %v160
        %v529 = vpop.permute.xlu0 %528
        %531 = vset.pattern.permute.xlu0 2
        %532 = vperm.xlu0 %531, %v161
        %v533 = vpop.permute.xlu0 %532
        %535 = vset.pattern.permute.xlu0 2
        %536 = vperm.xlu0 %535, %v162
        %v537 = vpop.permute.xlu0 %536
        %539 = vset.pattern.permute.xlu0 2
        %540 = vperm.xlu0 %539, %v163
        %v541 = vpop.permute.xlu0 %540
        %543 = vset.pattern.permute.xlu0 2
        %544 = vperm.xlu0 %543, %v164
        %v545 = vpop.permute.xlu0 %544
        %547 = vset.pattern.permute.xlu0 2
        %548 = vperm.xlu0 %547, %v165
        %v549 = vpop.permute.xlu0 %548
        %551 = vset.pattern.permute.xlu0 2
        %552 = vperm.xlu0 %551, %v166
        %v553 = vpop.permute.xlu0 %552
        %555 = vset.pattern.permute.xlu0 2
        %556 = vperm.xlu0 %555, %v167
        %v557 = vpop.permute.xlu0 %556
        %559 = vset.pattern.permute.xlu0 2
        %560 = vperm.xlu0 %559, %v168
        %v561 = vpop.permute.xlu0 %560
        %563 = vset.pattern.permute.xlu0 2
        %564 = vperm.xlu0 %563, %v169
        %v565 = vpop.permute.xlu0 %564
        %567 = vset.pattern.permute.xlu0 2
        %568 = vperm.xlu0 %567, %v170
        %v569 = vpop.permute.xlu0 %568
        %571 = vset.pattern.permute.xlu0 2
        %572 = vperm.xlu0 %571, %v171
        %v573 = vpop.permute.xlu0 %572
        %575 = vset.pattern.permute.xlu0 2
        %576 = vperm.xlu0 %575, %v172
        %v577 = vpop.permute.xlu0 %576
        %579 = vset.pattern.permute.xlu0 2
        %580 = vperm.xlu0 %579, %v173
        %v581 = vpop.permute.xlu0 %580
        %583 = vset.pattern.permute.xlu0 2
        %584 = vperm.xlu0 %583, %v174
        %v585 = vpop.permute.xlu0 %584
        %587 = vset.pattern.permute.xlu0 2
        %588 = vperm.xlu0 %587, %v175
        %v589 = vpop.permute.xlu0 %588
        %v591 = vlaneseq
        %v592 = vshrl.u32 %v591, 7
        %v593 = vsub.s32 0, %v592
        %v594 = vrot.slane %v526, %v593
        %v595 = vsub.f32 %v529, %v594
        %v596 = vsub.f32 %v533, %v594
        %v597 = vsub.f32 %v537, %v594
        %v598 = vsub.f32 %v541, %v594
        %v599 = vsub.f32 %v545, %v594
        %v600 = vsub.f32 %v549, %v594
        %v601 = vsub.f32 %v553, %v594
        %v602 = vsub.f32 %v557, %v594
        %v603 = vsub.f32 %v561, %v594
        %v604 = vsub.f32 %v565, %v594
        %v605 = vsub.f32 %v569, %v594
        %v606 = vsub.f32 %v573, %v594
        %v607 = vsub.f32 %v577, %v594
        %v608 = vsub.f32 %v581, %v594
        %v609 = vsub.f32 %v585, %v594
        %v610 = vsub.f32 %v589, %v594
        %v611 = vmul.f32 %v595, %v595
        %v612 = vmul.f32 %v596, %v596
        %v613 = vmul.f32 %v597, %v597
        %v614 = vmul.f32 %v598, %v598
        %v615 = vmul.f32 %v599, %v599
        %v616 = vmul.f32 %v600, %v600
        %v617 = vmul.f32 %v601, %v601
        %v618 = vmul.f32 %v602, %v602
        %v619 = vmul.f32 %v603, %v603
        %v620 = vmul.f32 %v604, %v604
        %v621 = vmul.f32 %v605, %v605
        %v622 = vmul.f32 %v606, %v606
        %v623 = vmul.f32 %v607, %v607
        %v624 = vmul.f32 %v608, %v608
        %v625 = vmul.f32 %v609, %v609
        %v626 = vmul.f32 %v610, %v610
        %v627 = vsub.f32 0.0, %v611
        %v628 = vsub.f32 0.0, %v612
        %v629 = vsub.f32 0.0, %v613
        %v630 = vsub.f32 0.0, %v614
        %v631 = vsub.f32 0.0, %v615
        %v632 = vsub.f32 0.0, %v616
        %v633 = vsub.f32 0.0, %v617
        %v634 = vsub.f32 0.0, %v618
        %v635 = vsub.f32 0.0, %v619
        %v636 = vsub.f32 0.0, %v620
        %v637 = vsub.f32 0.0, %v621
        %v638 = vsub.f32 0.0, %v622
        %v639 = vsub.f32 0.0, %v623
        %v640 = vsub.f32 0.0, %v624
        %v641 = vsub.f32 0.0, %v625
        %v642 = vsub.f32 0.0, %v626
        %v643 = vmul.f32 %v627, 1.442695
        %v644 = vpow.pop %v643
        %v645 = vmul.f32 %v628, 1.442695
        %v646 = vpow.pop %v645
        %v647 = vmul.f32 %v629, 1.442695
        %v648 = vpow.pop %v647
        %v649 = vmul.f32 %v630, 1.442695
        %v650 = vpow.pop %v649
        %v651 = vmul.f32 %v631, 1.442695
        %v652 = vpow.pop %v651
        %v653 = vmul.f32 %v632, 1.442695
        %v654 = vpow.pop %v653
        %v655 = vmul.f32 %v633, 1.442695
        %v656 = vpow.pop %v655
        %v657 = vmul.f32 %v634, 1.442695
        %v658 = vpow.pop %v657
        %v659 = vmul.f32 %v635, 1.442695
        %v660 = vpow.pop %v659
        %v661 = vmul.f32 %v636, 1.442695
        %v662 = vpow.pop %v661
        %v663 = vmul.f32 %v637, 1.442695
        %v664 = vpow.pop %v663
        %v665 = vmul.f32 %v638, 1.442695
        %v666 = vpow.pop %v665
        %v667 = vmul.f32 %v639, 1.442695
        %v668 = vpow.pop %v667
        %v669 = vmul.f32 %v640, 1.442695
        %v670 = vpow.pop %v669
        %v671 = vmul.f32 %v641, 1.442695
        %v672 = vpow.pop %v671
        %v673 = vmul.f32 %v642, 1.442695
        %v674 = vpow.pop %v673
        %v675 = vadd.f32 %v510, %v644
        %v676 = vadd.f32 %v511, %v646
        %v677 = vadd.f32 %v512, %v648
        %v678 = vadd.f32 %v513, %v650
        %v679 = vadd.f32 %v514, %v652
        %v680 = vadd.f32 %v515, %v654
        %v681 = vadd.f32 %v516, %v656
        %v682 = vadd.f32 %v517, %v658
        %v683 = vadd.f32 %v518, %v660
        %v684 = vadd.f32 %v519, %v662
        %v685 = vadd.f32 %v520, %v664
        %v686 = vadd.f32 %v521, %v666
        %v687 = vadd.f32 %v522, %v668
        %v688 = vadd.f32 %v523, %v670
        %v689 = vadd.f32 %v524, %v672
        %v690 = vadd.f32 %v525, %v674
        %v691 = vld [vmem:[%s179 + $0x3] sm:$0x1]
        %692 = vset.pattern.permute.xlu0 3
        %693 = vperm.xlu0 %692, %v160
        %v694 = vpop.permute.xlu0 %693
        %696 = vset.pattern.permute.xlu0 3
        %697 = vperm.xlu0 %696, %v161
        %v698 = vpop.permute.xlu0 %697
        %700 = vset.pattern.permute.xlu0 3
        %701 = vperm.xlu0 %700, %v162
        %v702 = vpop.permute.xlu0 %701
        %704 = vset.pattern.permute.xlu0 3
        %705 = vperm.xlu0 %704, %v163
        %v706 = vpop.permute.xlu0 %705
        %708 = vset.pattern.permute.xlu0 3
        %709 = vperm.xlu0 %708, %v164
        %v710 = vpop.permute.xlu0 %709
        %712 = vset.pattern.permute.xlu0 3
        %713 = vperm.xlu0 %712, %v165
        %v714 = vpop.permute.xlu0 %713
        %716 = vset.pattern.permute.xlu0 3
        %717 = vperm.xlu0 %716, %v166
        %v718 = vpop.permute.xlu0 %717
        %720 = vset.pattern.permute.xlu0 3
        %721 = vperm.xlu0 %720, %v167
        %v722 = vpop.permute.xlu0 %721
        %724 = vset.pattern.permute.xlu0 3
        %725 = vperm.xlu0 %724, %v168
        %v726 = vpop.permute.xlu0 %725
        %728 = vset.pattern.permute.xlu0 3
        %729 = vperm.xlu0 %728, %v169
        %v730 = vpop.permute.xlu0 %729
        %732 = vset.pattern.permute.xlu0 3
        %733 = vperm.xlu0 %732, %v170
        %v734 = vpop.permute.xlu0 %733
        %736 = vset.pattern.permute.xlu0 3
        %737 = vperm.xlu0 %736, %v171
        %v738 = vpop.permute.xlu0 %737
        %740 = vset.pattern.permute.xlu0 3
        %741 = vperm.xlu0 %740, %v172
        %v742 = vpop.permute.xlu0 %741
        %744 = vset.pattern.permute.xlu0 3
        %745 = vperm.xlu0 %744, %v173
        %v746 = vpop.permute.xlu0 %745
        %748 = vset.pattern.permute.xlu0 3
        %749 = vperm.xlu0 %748, %v174
        %v750 = vpop.permute.xlu0 %749
        %752 = vset.pattern.permute.xlu0 3
        %753 = vperm.xlu0 %752, %v175
        %v754 = vpop.permute.xlu0 %753
        %v756 = vlaneseq
        %v757 = vshrl.u32 %v756, 7
        %v758 = vsub.s32 0, %v757
        %v759 = vrot.slane %v691, %v758
        %v760 = vsub.f32 %v694, %v759
        %v761 = vsub.f32 %v698, %v759
        %v762 = vsub.f32 %v702, %v759
        %v763 = vsub.f32 %v706, %v759
        %v764 = vsub.f32 %v710, %v759
        %v765 = vsub.f32 %v714, %v759
        %v766 = vsub.f32 %v718, %v759
        %v767 = vsub.f32 %v722, %v759
        %v768 = vsub.f32 %v726, %v759
        %v769 = vsub.f32 %v730, %v759
        %v770 = vsub.f32 %v734, %v759
        %v771 = vsub.f32 %v738, %v759
        %v772 = vsub.f32 %v742, %v759
        %v773 = vsub.f32 %v746, %v759
        %v774 = vsub.f32 %v750, %v759
        %v775 = vsub.f32 %v754, %v759
        %v776 = vmul.f32 %v760, %v760
        %v777 = vmul.f32 %v761, %v761
        %v778 = vmul.f32 %v762, %v762
        %v779 = vmul.f32 %v763, %v763
        %v780 = vmul.f32 %v764, %v764
        %v781 = vmul.f32 %v765, %v765
        %v782 = vmul.f32 %v766, %v766
        %v783 = vmul.f32 %v767, %v767
        %v784 = vmul.f32 %v768, %v768
        %v785 = vmul.f32 %v769, %v769
        %v786 = vmul.f32 %v770, %v770
        %v787 = vmul.f32 %v771, %v771
        %v788 = vmul.f32 %v772, %v772
        %v789 = vmul.f32 %v773, %v773
        %v790 = vmul.f32 %v774, %v774
        %v791 = vmul.f32 %v775, %v775
        %v792 = vsub.f32 0.0, %v776
        %v793 = vsub.f32 0.0, %v777
        %v794 = vsub.f32 0.0, %v778
        %v795 = vsub.f32 0.0, %v779
        %v796 = vsub.f32 0.0, %v780
        %v797 = vsub.f32 0.0, %v781
        %v798 = vsub.f32 0.0, %v782
        %v799 = vsub.f32 0.0, %v783
        %v800 = vsub.f32 0.0, %v784
        %v801 = vsub.f32 0.0, %v785
        %v802 = vsub.f32 0.0, %v786
        %v803 = vsub.f32 0.0, %v787
        %v804 = vsub.f32 0.0, %v788
        %v805 = vsub.f32 0.0, %v789
        %v806 = vsub.f32 0.0, %v790
        %v807 = vsub.f32 0.0, %v791
        %v808 = vmul.f32 %v792, 1.442695
        %v809 = vpow.pop %v808
        %v810 = vmul.f32 %v793, 1.442695
        %v811 = vpow.pop %v810
        %v812 = vmul.f32 %v794, 1.442695
        %v813 = vpow.pop %v812
        %v814 = vmul.f32 %v795, 1.442695
        %v815 = vpow.pop %v814
        %v816 = vmul.f32 %v796, 1.442695
        %v817 = vpow.pop %v816
        %v818 = vmul.f32 %v797, 1.442695
        %v819 = vpow.pop %v818
        %v820 = vmul.f32 %v798, 1.442695
        %v821 = vpow.pop %v820
        %v822 = vmul.f32 %v799, 1.442695
        %v823 = vpow.pop %v822
        %v824 = vmul.f32 %v800, 1.442695
        %v825 = vpow.pop %v824
        %v826 = vmul.f32 %v801, 1.442695
        %v827 = vpow.pop %v826
        %v828 = vmul.f32 %v802, 1.442695
        %v829 = vpow.pop %v828
        %v830 = vmul.f32 %v803, 1.442695
        %v831 = vpow.pop %v830
        %v832 = vmul.f32 %v804, 1.442695
        %v833 = vpow.pop %v832
        %v834 = vmul.f32 %v805, 1.442695
        %v835 = vpow.pop %v834
        %v836 = vmul.f32 %v806, 1.442695
        %v837 = vpow.pop %v836
        %v838 = vmul.f32 %v807, 1.442695
        %v839 = vpow.pop %v838
        %v840 = vadd.f32 %v675, %v809
        %v841 = vadd.f32 %v676, %v811
        %v842 = vadd.f32 %v677, %v813
        %v843 = vadd.f32 %v678, %v815
        %v844 = vadd.f32 %v679, %v817
        %v845 = vadd.f32 %v680, %v819
        %v846 = vadd.f32 %v681, %v821
        %v847 = vadd.f32 %v682, %v823
        %v848 = vadd.f32 %v683, %v825
        %v849 = vadd.f32 %v684, %v827
        %v850 = vadd.f32 %v685, %v829
        %v851 = vadd.f32 %v686, %v831
        %v852 = vadd.f32 %v687, %v833
        %v853 = vadd.f32 %v688, %v835
        %v854 = vadd.f32 %v689, %v837
        %v855 = vadd.f32 %v690, %v839
        %856 = vst [vmem:[%s151] sm:$0xff] %v840
        %857 = vst [vmem:[%s151 + $0x8] sm:$0xff] %v841
        %858 = vst [vmem:[%s151 + $0x10] sm:$0xff] %v842
        %859 = vst [vmem:[%s151 + $0x18] sm:$0xff] %v843
        %860 = vst [vmem:[%s151 + $0x20] sm:$0xff] %v844
        %861 = vst [vmem:[%s151 + $0x28] sm:$0xff] %v845
        %862 = vst [vmem:[%s151 + $0x30] sm:$0xff] %v846
        %863 = vst [vmem:[%s151 + $0x38] sm:$0xff] %v847
        %864 = vst [vmem:[%s151 + $0x40] sm:$0xff] %v848
        %865 = vst [vmem:[%s151 + $0x48] sm:$0xff] %v849
        %866 = vst [vmem:[%s151 + $0x50] sm:$0xff] %v850
        %867 = vst [vmem:[%s151 + $0x58] sm:$0xff] %v851
        %868 = vst [vmem:[%s151 + $0x60] sm:$0xff] %v852
        %869 = vst [vmem:[%s151 + $0x68] sm:$0xff] %v853
        %870 = vst [vmem:[%s151 + $0x70] sm:$0xff] %v854
        %871 = vst [vmem:[%s151 + $0x78] sm:$0xff] %v855
        %s872 = sand.u32 %s85, 1
        %s873 = scalar_lea.sflag [#allocation3], %s872
        %s874 = sand.u32 %s85, 1
        %s875 = smul.addr %s874, 128
        %s876 = scalar_lea.vmem [#allocation2], %s875
        // Predicated region
        $region29: #{tpu_custom_call.1} parent=27 // pred_check
          %p877 = pneg %p95
        $region30: #{tpu_custom_call.1} parent=27 // pred_check_branch
          %879 = sbr.rel (%p877) target = $region32
        $region31: #{tpu_custom_call.1} parent=27 // pred_region
          %s880 = smul.u32 16, %s20
          %s882 = ssub.s32 2048, 2048
          %883 = vsyncadd %s873, %s882
          %s884 = smul.addr %s880, 2
          %s885 = sadd.s32 %s21, %s884
          %s886 = smul.addr %s885, 128
          %s887 = scalar_lea.hbm %s2, %s886
          %s888 = sshll.u32 %s876, 4
          %s889 = int_to_ptr.vmem [resolvable:$true] %s888
          %894 = dma.vmem_to_hbm [thread:$0]  %s889, 2048, %s887, %s873, 128, 256, 8
        $region32: #{tpu_custom_call.1} parent=27 // pred_fallthru
          _
      $region28: #{tpu_custom_call.1} parent=5 // pred_fallthru
        _
      %p895 = scmp.le.s32.totalorder 2, %s11
      // Predicated region
      $region33: #{tpu_custom_call.1} parent=5 // pred_check
        %p896 = pneg %p895
      $region34: #{tpu_custom_call.1} parent=5 // pred_check_branch
        %898 = sbr.rel (%p896) target = $region36
      $region35: #{tpu_custom_call.1} parent=5 // pred_region
        %s899 = ssub.s32 %s11, 2
        // Predicated region
        $region37: #{tpu_custom_call.1} parent=35 // pred_check
          %p900 = pneg %p101
        $region38: #{tpu_custom_call.1} parent=35 // pred_check_branch
          %902 = sbr.rel (%p900) target = $region40
        $region39: #{tpu_custom_call.1} parent=35 // pred_region
          %s903 = sand.u32 %s86, 1
          %s904 = scalar_lea.sflag [#allocation3], %s903
          %s905 = sand.u32 %s86, 1
          %s906 = smul.addr %s905, 128
          %s907 = scalar_lea.vmem [#allocation2], %s906
          %908 = dma.done %s904, 2048
        $region40: #{tpu_custom_call.1} parent=35 // pred_fallthru
          _
      $region36: #{tpu_custom_call.1} parent=5 // pred_fallthru
        _
    $region6: #{tpu_custom_call.1} parent=1 // loop_footer
      %s15 = sadd.s32 1, %s11
    $region7: #{tpu_custom_call.1} parent=1 // loop_footer_branch
      %10 = sbr.rel target = $region3
    $region8: #{tpu_custom_call.1} parent=1 // loop_exit
      _
    %909 = vsyncpa [#allocation3], 1
    %s910 = scalar_lea.sflag [#allocation3], 1
    %911 = vsyncpa %s910, 1

</llo_original>
